<compile_context>
chip_gen: v5e
topology: v5e:2x2
jax: 0.10.0
libtpu: 0.0.40
codegen_flags: <defaults>
</compile_context>

<pallas_src>
import functools

import jax
import jax.numpy as jnp
from jax.experimental import pallas as pl
from jax.experimental.pallas import tpu as pltpu


LANE = 128      # lane width (last-dim alignment)
SUBLANE = 8     # f32 sublane tile


def _round_up(n, m):
    return ((n + m - 1) // m) * m


# ---------------- fused Pallas kernel ----------------

def _make_fused_mlp_kernel(num_hidden, out_valid):
    """Builds the fused Linear->ReLU (xN) -> Linear -> log_softmax kernel.

    Ref order: x, (w, b) * num_hidden, w_fc, b_fc, out.
    Feature dims are pre-padded to multiples of 128; activations stay on-chip.
    """

    def kernel(x_ref, *refs):
        o_ref = refs[-1]
        wb = refs[:-1]

        h = x_ref[...]                                    # bf16 (tb, in_pad)
        for i in range(num_hidden):                       # unrolled at trace time
            w = wb[2 * i][...]                            # bf16 (in_pad, out_pad)
            b = wb[2 * i + 1][...]                        # f32  (1, out_pad)
            y = jnp.dot(h, w, preferred_element_type=jnp.float32) + b
            # Dropout is identity in eval mode.
            h = jnp.maximum(y, 0.0).astype(jnp.bfloat16)

        w = wb[2 * num_hidden][...]
        b = wb[2 * num_hidden + 1][...]
        logits = jnp.dot(h, w, preferred_element_type=jnp.float32) + b

        # Mask zero-padded logit lanes so they don't pollute log_softmax.
        lane = jax.lax.broadcasted_iota(jnp.int32, logits.shape, 1)
        logits = jnp.where(lane < out_valid, logits, jnp.float32(-1e30))

        m = jnp.max(logits, axis=1, keepdims=True)
        shifted = logits - m
        lse = jnp.log(jnp.sum(jnp.exp(shifted), axis=1, keepdims=True))
        o_ref[...] = shifted - lse

    return kernel


# ---------------- parameter handling ----------------

def init_classifier_params(key, input_size, output_size, hidden_units):
    """PyTorch-style uniform(-1/sqrt(fan_in), 1/sqrt(fan_in)) init, deterministic.

    Returns a list of (w, b) with w already transposed to (in, out);
    the last entry is the final fc layer.
    """
    sizes = [input_size] + list(hidden_units) + [output_size]
    params = []
    for h_in, h_out in zip(sizes[:-1], sizes[1:]):
        key, kw, kb = jax.random.split(key, 3)
        bound = 1.0 / jnp.sqrt(jnp.float32(h_in))
        w = jax.random.uniform(kw, (h_in, h_out), jnp.float32, -bound, bound)
        b = jax.random.uniform(kb, (1, h_out), jnp.float32, -bound, bound)
        params.append((w, b))
    return params


def prepare_padded_params(params):
    """Zero-pad every weight/bias to 128-lane multiples; weights -> bf16, biases f32."""
    padded = []
    for w, b in params:
        in_p = _round_up(w.shape[0], LANE)
        out_p = _round_up(w.shape[1], LANE)
        w_p = jnp.pad(w, ((0, in_p - w.shape[0]), (0, out_p - w.shape[1])))
        b_p = jnp.pad(b, ((0, 0), (0, out_p - b.shape[1])))
        padded.append((w_p.astype(jnp.bfloat16), b_p.astype(jnp.float32)))
    return padded


# ---------------- forward wrapper ----------------

@functools.partial(jax.jit, static_argnames=("output_size",))
def classifier_forward(padded_params, x, *, output_size):
    batch, in_dim = x.shape
    num_hidden = len(padded_params) - 1
    in_pad = padded_params[0][0].shape[0]
    out_pad = padded_params[-1][0].shape[1]

    # Pad batch to a sublane multiple and input features to the padded lane width.
    batch_p = _round_up(batch, SUBLANE)
    x_p = jnp.pad(x, ((0, batch_p - batch), (0, in_pad - in_dim))).astype(jnp.bfloat16)

    # Batch tile (multiple of 8 sublanes); big tiles amortize per-step overhead.
    tb = min(batch_p, 256)
    if batch_p % tb != 0:
        new_bp = _round_up(batch_p, tb)
        x_p = jnp.pad(x_p, ((0, new_bp - batch_p), (0, 0)))
        batch_p = new_bp
    grid = (batch_p // tb,)

    kernel = _make_fused_mlp_kernel(num_hidden, output_size)

    flat_wb = []
    in_specs = [pl.BlockSpec((tb, in_pad), lambda i: (i, 0))]
    for w, b in padded_params:
        flat_wb.append(w)
        flat_wb.append(b)
        in_specs.append(pl.BlockSpec(w.shape, lambda i: (0, 0)))
        in_specs.append(pl.BlockSpec(b.shape, lambda i: (0, 0)))

    out = pl.pallas_call(
        kernel,
        out_shape=jax.ShapeDtypeStruct((batch_p, out_pad), jnp.float32),
        grid_spec=pltpu.PrefetchScalarGridSpec(
            num_scalar_prefetch=0,
            grid=grid,
            in_specs=in_specs,
            out_specs=pl.BlockSpec((tb, out_pad), lambda i: (i, 0)),
        ),
        compiler_params=pltpu.CompilerParams(
            dimension_semantics=("parallel",),   # shards batch tiles across TCs on v7x
        ),
    )(x_p, *flat_wb)

    # Slice the lane-dense padded output back to the real logits.
    return out[:batch, :output_size]


# ---------------- pure-JAX reference (same bf16-matmul / f32-accum math) ----------------

def classifier_forward_ref(params, x):
    h = x.astype(jnp.bfloat16)
    for w, b in params[:-1]:
        y = jnp.dot(h, w.astype(jnp.bfloat16), preferred_element_type=jnp.float32) + b
        h = jnp.maximum(y, 0.0).astype(jnp.bfloat16)
    w, b = params[-1]
    logits = jnp.dot(h, w.astype(jnp.bfloat16), preferred_element_type=jnp.float32) + b
    return jax.nn.log_softmax(logits, axis=1)


if __name__ == "__main__":
    key = jax.random.PRNGKey(0)
    key, kx, kp = jax.random.split(key, 3)

    batch = 8
    input_size = 32
    hidden_units = [64, 32]
    output_size = 10

    x = jax.random.normal(kx, (batch, input_size), jnp.float32)
    params = init_classifier_params(kp, input_size, output_size, hidden_units)
    padded_params = prepare_padded_params(params)

    out = classifier_forward(padded_params, x, output_size=output_size)
    out = jax.block_until_ready(out)

    ref = classifier_forward_ref(params, x)
    assert out.shape == (batch, output_size)
    assert jnp.allclose(out, ref, atol=1e-4, rtol=1e-4), "mismatch vs reference"
    # log_softmax rows must exponentiate to probability 1
    assert jnp.allclose(jnp.sum(jnp.exp(out), axis=1), 1.0, atol=1e-3)

    print("KERNEL_OK")
</pallas_src>

<mosaic_0001>
module attributes {stable_mosaic.version = 11 : i64} {
  func.func @kernel(%arg0: i32, %arg1: memref<8x128xbf16, #tpu.memory_space<vmem>>, %arg2: memref<128x128xbf16, #tpu.memory_space<vmem>>, %arg3: memref<1x128xf32, #tpu.memory_space<vmem>>, %arg4: memref<128x128xbf16, #tpu.memory_space<vmem>>, %arg5: memref<1x128xf32, #tpu.memory_space<vmem>>, %arg6: memref<128x128xbf16, #tpu.memory_space<vmem>>, %arg7: memref<1x128xf32, #tpu.memory_space<vmem>>, %arg8: memref<8x128xf32, #tpu.memory_space<vmem>>) attributes {dimension_semantics = [#tpu.dimension_semantics<parallel>], iteration_bounds = array<i64: 1>, scalar_prefetch = 0 : i64, scratch_operands = 0 : i64, tpu.core_type = #tpu.core_type<tc>, window_params = [{transform_indices = @transform_0, window_bounds = array<i64: 8, 128>}, {pipeline_mode = #tpu.pipeline_mode<synchronous>, transform_indices = @transform_1, window_bounds = array<i64: 128, 128>}, {pipeline_mode = #tpu.pipeline_mode<synchronous>, transform_indices = @transform_2, window_bounds = array<i64: 1, 128>}, {pipeline_mode = #tpu.pipeline_mode<synchronous>, transform_indices = @transform_3, window_bounds = array<i64: 128, 128>}, {pipeline_mode = #tpu.pipeline_mode<synchronous>, transform_indices = @transform_4, window_bounds = array<i64: 1, 128>}, {pipeline_mode = #tpu.pipeline_mode<synchronous>, transform_indices = @transform_5, window_bounds = array<i64: 128, 128>}, {pipeline_mode = #tpu.pipeline_mode<synchronous>, transform_indices = @transform_6, window_bounds = array<i64: 1, 128>}, {transform_indices = @transform_7, window_bounds = array<i64: 8, 128>}]} {
    %c0 = arith.constant 0 : index
    %c0_0 = arith.constant 0 : index
    %0 = vector.load %arg1[%c0, %c0_0] : memref<8x128xbf16, #tpu.memory_space<vmem>>, vector<8x128xbf16>
    %c0_1 = arith.constant 0 : index
    %c0_2 = arith.constant 0 : index
    %1 = vector.load %arg2[%c0_1, %c0_2] : memref<128x128xbf16, #tpu.memory_space<vmem>>, vector<128x128xbf16>
    %c0_3 = arith.constant 0 : index
    %c0_4 = arith.constant 0 : index
    %2 = vector.load %arg3[%c0_3, %c0_4] : memref<1x128xf32, #tpu.memory_space<vmem>>, vector<1x128xf32>
    %cst = arith.constant dense<0.000000e+00> : vector<8x128xf32>
    %3 = tpu.matmul %0, %1, %cst {dimension_numbers = #tpu.dot_dimension_numbers<[1], [0], [0], [1], [0, 0, 1, 1], [], []>} : vector<8x128xbf16>, vector<128x128xbf16>, vector<8x128xf32> -> vector<8x128xf32>
    %4 = vector.broadcast %2 : vector<1x128xf32> to vector<8x128xf32>
    %5 = arith.addf %3, %4 : vector<8x128xf32>
    %cst_5 = arith.constant 0.000000e+00 : f32
    %6 = vector.broadcast %cst_5 : f32 to vector<8x128xf32>
    %7 = arith.maximumf %5, %6 : vector<8x128xf32>
    %8 = arith.truncf %7 : vector<8x128xf32> to vector<8x128xbf16>
    %c0_6 = arith.constant 0 : index
    %c0_7 = arith.constant 0 : index
    %9 = vector.load %arg4[%c0_6, %c0_7] : memref<128x128xbf16, #tpu.memory_space<vmem>>, vector<128x128xbf16>
    %c0_8 = arith.constant 0 : index
    %c0_9 = arith.constant 0 : index
    %10 = vector.load %arg5[%c0_8, %c0_9] : memref<1x128xf32, #tpu.memory_space<vmem>>, vector<1x128xf32>
    %cst_10 = arith.constant dense<0.000000e+00> : vector<8x128xf32>
    %11 = tpu.matmul %8, %9, %cst_10 {dimension_numbers = #tpu.dot_dimension_numbers<[1], [0], [0], [1], [0, 0, 1, 1], [], []>} : vector<8x128xbf16>, vector<128x128xbf16>, vector<8x128xf32> -> vector<8x128xf32>
    %12 = vector.broadcast %10 : vector<1x128xf32> to vector<8x128xf32>
    %13 = arith.addf %11, %12 : vector<8x128xf32>
    %cst_11 = arith.constant 0.000000e+00 : f32
    %14 = vector.broadcast %cst_11 : f32 to vector<8x128xf32>
    %15 = arith.maximumf %13, %14 : vector<8x128xf32>
    %16 = arith.truncf %15 : vector<8x128xf32> to vector<8x128xbf16>
    %c0_12 = arith.constant 0 : index
    %c0_13 = arith.constant 0 : index
    %17 = vector.load %arg6[%c0_12, %c0_13] : memref<128x128xbf16, #tpu.memory_space<vmem>>, vector<128x128xbf16>
    %c0_14 = arith.constant 0 : index
    %c0_15 = arith.constant 0 : index
    %18 = vector.load %arg7[%c0_14, %c0_15] : memref<1x128xf32, #tpu.memory_space<vmem>>, vector<1x128xf32>
    %cst_16 = arith.constant dense<0.000000e+00> : vector<8x128xf32>
    %19 = tpu.matmul %16, %17, %cst_16 {dimension_numbers = #tpu.dot_dimension_numbers<[1], [0], [0], [1], [0, 0, 1, 1], [], []>} : vector<8x128xbf16>, vector<128x128xbf16>, vector<8x128xf32> -> vector<8x128xf32>
    %20 = vector.broadcast %18 : vector<1x128xf32> to vector<8x128xf32>
    %21 = arith.addf %19, %20 : vector<8x128xf32>
    %22 = tpu.iota {dimensions = array<i32: 1>} : vector<8x128xi32>
    %c10_i32 = arith.constant 10 : i32
    %23 = vector.broadcast %c10_i32 : i32 to vector<8x128xi32>
    %24 = arith.cmpi slt, %22, %23 : vector<8x128xi32>
    %cst_17 = arith.constant -1.000000e+30 : f32
    %25 = vector.broadcast %cst_17 : f32 to vector<8x128xf32>
    %26 = arith.select %24, %21, %25 : vector<8x128xi1>, vector<8x128xf32>
    %cst_18 = arith.constant dense<0xFF800000> : vector<8xf32>
    %27 = vector.multi_reduction <maximumf>, %26, %cst_18 [1] : vector<8x128xf32> to vector<8xf32>
    %28 = vector.shape_cast %27 : vector<8xf32> to vector<8x1xf32>
    %29 = vector.broadcast %28 : vector<8x1xf32> to vector<8x128xf32>
    %30 = arith.subf %26, %29 : vector<8x128xf32>
    %31 = math.exp %30 : vector<8x128xf32>
    %cst_19 = arith.constant dense<0.000000e+00> : vector<8xf32>
    %32 = vector.multi_reduction <add>, %31, %cst_19 [1] : vector<8x128xf32> to vector<8xf32>
    %33 = vector.shape_cast %32 : vector<8xf32> to vector<8x1xf32>
    %34 = math.log %33 : vector<8x1xf32>
    %35 = vector.broadcast %34 : vector<8x1xf32> to vector<8x128xf32>
    %36 = arith.subf %30, %35 : vector<8x128xf32>
    %c0_20 = arith.constant 0 : index
    %c0_21 = arith.constant 0 : index
    %37 = vector.load %arg8[%c0_20, %c0_21] : memref<8x128xf32, #tpu.memory_space<vmem>>, vector<8x128xf32>
    tpu.vector_store %arg8[%c0_20, %c0_21], %36 {strides = array<i32>} : memref<8x128xf32, #tpu.memory_space<vmem>>, vector<8x128xf32>,
    return
  }
  func.func @transform_0(%arg0: i32) -> (i32, i32) {
    %c0_i32 = arith.constant 0 : i32
    %c0_i32_0 = arith.constant 0 : i32
    return %arg0, %c0_i32 : i32, i32
  }
  func.func @transform_1(%arg0: i32) -> (i32, i32) {
    %c0_i32 = arith.constant 0 : i32
    %c0_i32_0 = arith.constant 0 : i32
    %c0_i32_1 = arith.constant 0 : i32
    return %c0_i32, %c0_i32_0 : i32, i32
  }
  func.func @transform_2(%arg0: i32) -> (i32, i32) {
    %c0_i32 = arith.constant 0 : i32
    %c0_i32_0 = arith.constant 0 : i32
    %c0_i32_1 = arith.constant 0 : i32
    return %c0_i32, %c0_i32_0 : i32, i32
  }
  func.func @transform_3(%arg0: i32) -> (i32, i32) {
    %c0_i32 = arith.constant 0 : i32
    %c0_i32_0 = arith.constant 0 : i32
    %c0_i32_1 = arith.constant 0 : i32
    return %c0_i32, %c0_i32_0 : i32, i32
  }
  func.func @transform_4(%arg0: i32) -> (i32, i32) {
    %c0_i32 = arith.constant 0 : i32
    %c0_i32_0 = arith.constant 0 : i32
    %c0_i32_1 = arith.constant 0 : i32
    return %c0_i32, %c0_i32_0 : i32, i32
  }
  func.func @transform_5(%arg0: i32) -> (i32, i32) {
    %c0_i32 = arith.constant 0 : i32
    %c0_i32_0 = arith.constant 0 : i32
    %c0_i32_1 = arith.constant 0 : i32
    return %c0_i32, %c0_i32_0 : i32, i32
  }
  func.func @transform_6(%arg0: i32) -> (i32, i32) {
    %c0_i32 = arith.constant 0 : i32
    %c0_i32_0 = arith.constant 0 : i32
    %c0_i32_1 = arith.constant 0 : i32
    return %c0_i32, %c0_i32_0 : i32, i32
  }
  func.func @transform_7(%arg0: i32) -> (i32, i32) {
    %c0_i32 = arith.constant 0 : i32
    %c0_i32_0 = arith.constant 0 : i32
    return %arg0, %c0_i32 : i32, i32
  }
}

</mosaic_0001>

<llo_original>
// kernel: classifier_forward.1
$region0: #{classifier_forward.1}
  #allocation0 [shape = 'u32[]', space=smem, size = 0x4, offset = 0x4, fixed_abs, tag = 'smem constant byte address 0x4 - core index']
  #allocation1 [shape = 'u32[72,128]{1,0:T(1,128)}', space=vmem, size = 0x9000, scoped, tag = 'internal scratch']
  %s0 = inlined_call_operand.vmem [shape: bf16[8,128], index: 0, kind: input, shape index: {}]
  %s1 = inlined_call_operand.hbm [shape: bf16[128,128], index: 1, kind: input, shape index: {}]
  %s2 = inlined_call_operand.vmem [shape: f32[1,128], index: 2, kind: input, shape index: {}]
  %s3 = inlined_call_operand.hbm [shape: bf16[128,128], index: 3, kind: input, shape index: {}]
  %s4 = inlined_call_operand.vmem [shape: f32[1,128], index: 4, kind: input, shape index: {}]
  %s5 = inlined_call_operand.hbm [shape: bf16[128,128], index: 5, kind: input, shape index: {}]
  %s6 = inlined_call_operand.vmem [shape: f32[1,128], index: 6, kind: input, shape index: {}]
  %s7 = inlined_call_operand.hbm [shape: f32[8,128], index: 7, kind: output, shape index: {}]
  %s8 = sld [smem:[#allocation0]]
  $region50: #{classifier_forward.1} parent=0
    _
  %s10 = ssub.s32 1, %s8
  %s11 = scalar_select 0, %s10, %s8
  $region1: #{classifier_forward.1} parent=0
    #allocation2 [shape = 'u8[32768]{0}', space=vmem, size = 0x8000, scoped, tag = 'input window, operand 1, single buffered']
    #allocation3 [shape = 's32[1]{0}', space=sflag, size = 0x4, scoped, tag = 'scoped memory for classifier_forward.1']
    #allocation4 [shape = 's32[1]{0}', space=sflag, size = 0x4, scoped, tag = 'scoped memory for classifier_forward.1']
    #allocation5 [shape = 'u8[32768]{0}', space=vmem, size = 0x8000, scoped, tag = 'input window, operand 3, single buffered']
    #allocation6 [shape = 's32[1]{0}', space=sflag, size = 0x4, scoped, tag = 'scoped memory for classifier_forward.1']
    #allocation7 [shape = 'u8[32768]{0}', space=vmem, size = 0x8000, scoped, tag = 'input window, operand 5, single buffered']
    #allocation8 [shape = 'u8[4096]{0}', space=vmem, size = 0x1000, scoped, tag = 'output window, operand 0, single buffered']
    %12 = vsyncpa [#allocation3], 0
    %13 = vsyncpa [#allocation6], 0
    %14 = vsyncpa [#allocation4], 0
    // Predicated region
    $region2: #{classifier_forward.1} parent=1 // pred_check
      _
    $region3: #{classifier_forward.1} parent=1 // pred_check_branch
      %16 = sbr.rel (0) target = $region5
    $region4: #{classifier_forward.1} parent=1 // pred_region
      _
    $region5: #{classifier_forward.1} parent=1 // pred_fallthru
      _
    // Predicated region
    $region6: #{classifier_forward.1} parent=1 // pred_check
      _
    $region7: #{classifier_forward.1} parent=1 // pred_check_branch
      %18 = sbr.rel (0) target = $region9
    $region8: #{classifier_forward.1} parent=1 // pred_region
      %20 = vsyncadd [#allocation3], 0
      %s21 = sshll.u32 %s1, 4
      %s22 = int_to_ptr.hbm [resolvable:$true] %s21
      %s23 = sshll.u32 [#allocation2], 4
      %s24 = int_to_ptr.vmem [resolvable:$true] %s23
      %29 = dma.hbm_to_vmem [thread:$0]  %s22, 1024, %s24, [#allocation3], 64, 64, 4
    $region9: #{classifier_forward.1} parent=1 // pred_fallthru
      _
    // Predicated region
    $region10: #{classifier_forward.1} parent=1 // pred_check
      _
    $region11: #{classifier_forward.1} parent=1 // pred_check_branch
      %31 = sbr.rel (0) target = $region13
    $region12: #{classifier_forward.1} parent=1 // pred_region
      _
    $region13: #{classifier_forward.1} parent=1 // pred_fallthru
      _
    // Predicated region
    $region14: #{classifier_forward.1} parent=1 // pred_check
      _
    $region15: #{classifier_forward.1} parent=1 // pred_check_branch
      %33 = sbr.rel (0) target = $region17
    $region16: #{classifier_forward.1} parent=1 // pred_region
      %35 = vsyncadd [#allocation6], 0
      %s36 = sshll.u32 %s3, 4
      %s37 = int_to_ptr.hbm [resolvable:$true] %s36
      %s38 = sshll.u32 [#allocation5], 4
      %s39 = int_to_ptr.vmem [resolvable:$true] %s38
      %44 = dma.hbm_to_vmem [thread:$0]  %s37, 1024, %s39, [#allocation6], 64, 64, 4
    $region17: #{classifier_forward.1} parent=1 // pred_fallthru
      _
    // Predicated region
    $region18: #{classifier_forward.1} parent=1 // pred_check
      _
    $region19: #{classifier_forward.1} parent=1 // pred_check_branch
      %46 = sbr.rel (0) target = $region21
    $region20: #{classifier_forward.1} parent=1 // pred_region
      _
    $region21: #{classifier_forward.1} parent=1 // pred_fallthru
      _
    // Predicated region
    $region22: #{classifier_forward.1} parent=1 // pred_check
      _
    $region23: #{classifier_forward.1} parent=1 // pred_check_branch
      %48 = sbr.rel (0) target = $region25
    $region24: #{classifier_forward.1} parent=1 // pred_region
      %50 = vsyncadd [#allocation6], 0
      %s51 = sshll.u32 %s5, 4
      %s52 = int_to_ptr.hbm [resolvable:$true] %s51
      %s53 = sshll.u32 [#allocation7], 4
      %s54 = int_to_ptr.vmem [resolvable:$true] %s53
      %59 = dma.hbm_to_vmem [thread:$0]  %s52, 1024, %s54, [#allocation6], 64, 64, 4
    $region25: #{classifier_forward.1} parent=1 // pred_fallthru
      _
    // Predicated region
    $region26: #{classifier_forward.1} parent=1 // pred_check
      _
    $region27: #{classifier_forward.1} parent=1 // pred_check_branch
      %61 = sbr.rel (0) target = $region29
    $region28: #{classifier_forward.1} parent=1 // pred_region
      _
    $region29: #{classifier_forward.1} parent=1 // pred_fallthru
      _
    // Predicated region
    $region30: #{classifier_forward.1} parent=1 // pred_check
      _
    $region31: #{classifier_forward.1} parent=1 // pred_check_branch
      %63 = sbr.rel (0) target = $region33
    $region32: #{classifier_forward.1} parent=1 // pred_region
      %65 = dma.done [#allocation3], 1024
    $region33: #{classifier_forward.1} parent=1 // pred_fallthru
      _
    // Predicated region
    $region34: #{classifier_forward.1} parent=1 // pred_check
      _
    $region35: #{classifier_forward.1} parent=1 // pred_check_branch
      %67 = sbr.rel (0) target = $region37
    $region36: #{classifier_forward.1} parent=1 // pred_region
      %69 = dma.done [#allocation6], 1024
    $region37: #{classifier_forward.1} parent=1 // pred_fallthru
      _
    // Predicated region
    $region38: #{classifier_forward.1} parent=1 // pred_check
      _
    $region39: #{classifier_forward.1} parent=1 // pred_check_branch
      %71 = sbr.rel (0) target = $region41
    $region40: #{classifier_forward.1} parent=1 // pred_region
      %73 = dma.done [#allocation6], 1024
    $region41: #{classifier_forward.1} parent=1 // pred_fallthru
      _
    %v74 = vld [vmem:[%s0] sm:$0xf]
    %v75 = vld [vmem:[#allocation2] sm:$0xf]
    %v76 = vld [vmem:[#allocation2 + $0x4] sm:$0xf]
    %v77 = vld [vmem:[#allocation2 + $0x8] sm:$0xf]
    %v78 = vld [vmem:[#allocation2 + $0xc] sm:$0xf]
    %v79 = vld [vmem:[#allocation2 + $0x10] sm:$0xf]
    %v80 = vld [vmem:[#allocation2 + $0x14] sm:$0xf]
    %v81 = vld [vmem:[#allocation2 + $0x18] sm:$0xf]
    %v82 = vld [vmem:[#allocation2 + $0x1c] sm:$0xf]
    %v83 = vld [vmem:[#allocation2 + $0x20] sm:$0xf]
    %v84 = vld [vmem:[#allocation2 + $0x24] sm:$0xf]
    %v85 = vld [vmem:[#allocation2 + $0x28] sm:$0xf]
    %v86 = vld [vmem:[#allocation2 + $0x2c] sm:$0xf]
    %v87 = vld [vmem:[#allocation2 + $0x30] sm:$0xf]
    %v88 = vld [vmem:[#allocation2 + $0x34] sm:$0xf]
    %v89 = vld [vmem:[#allocation2 + $0x38] sm:$0xf]
    %v90 = vld [vmem:[#allocation2 + $0x3c] sm:$0xf]
    %v91 = vld [vmem:[%s2] sm:$0x1]
    %v93 = vperm.slane %v91, 0
    %v111 = vunpack.c.l.b16 %v75
    %v112 = vunpack.c.l.b16 %v76
    %v113 = vunpack.c.l.b16 %v77
    %v114 = vunpack.c.l.b16 %v78
    %v115 = vunpack.c.l.b16 %v79
    %v116 = vunpack.c.l.b16 %v80
    %v117 = vunpack.c.l.b16 %v81
    %v118 = vunpack.c.l.b16 %v82
    %v119 = vunpack.c.l.b16 %v83
    %v120 = vunpack.c.l.b16 %v84
    %v121 = vunpack.c.l.b16 %v85
    %v122 = vunpack.c.l.b16 %v86
    %v123 = vunpack.c.l.b16 %v87
    %v124 = vunpack.c.l.b16 %v88
    %v125 = vunpack.c.l.b16 %v89
    %v126 = vunpack.c.l.b16 %v90
    %v127 = vpack.c.b16 %v112, %v111
    %v128 = vpack.c.b16 %v114, %v113
    %v129 = vpack.c.b16 %v116, %v115
    %v130 = vpack.c.b16 %v118, %v117
    %v131 = vpack.c.b16 %v120, %v119
    %v132 = vpack.c.b16 %v122, %v121
    %v133 = vpack.c.b16 %v124, %v123
    %v134 = vpack.c.b16 %v126, %v125
    %143 = vmatpush.bf16.msra.mxu0 %v134
    %144 = vmatpush.bf16.msra.mxu0 %v133
    %145 = vmatpush.bf16.msra.mxu0 %v132
    %146 = vmatpush.bf16.msra.mxu0 %v131
    %147 = vmatpush.bf16.msra.mxu0 %v130
    %148 = vmatpush.bf16.msra.mxu0 %v129
    %149 = vmatpush.bf16.msra.mxu0 %v128
    %150 = vmatpush.bf16.msra.mxu0 %v127
    %151 = vmatmul.bf16.gmra.mxu0 %v74
    %v152 = vpop.f32.mrf.mxu0
    %v153 = vadd.f32 %v93, %v152
    %v154 = vpop.f32.mrf.mxu0
    %155 = vdwg.mxu0
    %v156 = vmax.f32 %v153, 0.0
    %v157 = vpack.c.bf16 %v156, %v156
    %v158 = vld [vmem:[#allocation5] sm:$0xf]
    %v159 = vld [vmem:[#allocation5 + $0x4] sm:$0xf]
    %v160 = vld [vmem:[#allocation5 + $0x8] sm:$0xf]
    %v161 = vld [vmem:[#allocation5 + $0xc] sm:$0xf]
    %v162 = vld [vmem:[#allocation5 + $0x10] sm:$0xf]
    %v163 = vld [vmem:[#allocation5 + $0x14] sm:$0xf]
    %v164 = vld [vmem:[#allocation5 + $0x18] sm:$0xf]
    %v165 = vld [vmem:[#allocation5 + $0x1c] sm:$0xf]
    %v166 = vld [vmem:[#allocation5 + $0x20] sm:$0xf]
    %v167 = vld [vmem:[#allocation5 + $0x24] sm:$0xf]
    %v168 = vld [vmem:[#allocation5 + $0x28] sm:$0xf]
    %v169 = vld [vmem:[#allocation5 + $0x2c] sm:$0xf]
    %v170 = vld [vmem:[#allocation5 + $0x30] sm:$0xf]
    %v171 = vld [vmem:[#allocation5 + $0x34] sm:$0xf]
    %v172 = vld [vmem:[#allocation5 + $0x38] sm:$0xf]
    %v173 = vld [vmem:[#allocation5 + $0x3c] sm:$0xf]
    %v174 = vld [vmem:[%s4] sm:$0x1]
    %v176 = vperm.slane %v174, 0
    %v194 = vunpack.c.l.b16 %v158
    %v195 = vunpack.c.l.b16 %v159
    %v196 = vunpack.c.l.b16 %v160
    %v197 = vunpack.c.l.b16 %v161
    %v198 = vunpack.c.l.b16 %v162
    %v199 = vunpack.c.l.b16 %v163
    %v200 = vunpack.c.l.b16 %v164
    %v201 = vunpack.c.l.b16 %v165
    %v202 = vunpack.c.l.b16 %v166
    %v203 = vunpack.c.l.b16 %v167
    %v204 = vunpack.c.l.b16 %v168
    %v205 = vunpack.c.l.b16 %v169
    %v206 = vunpack.c.l.b16 %v170
    %v207 = vunpack.c.l.b16 %v171
    %v208 = vunpack.c.l.b16 %v172
    %v209 = vunpack.c.l.b16 %v173
    %v210 = vpack.c.b16 %v195, %v194
    %v211 = vpack.c.b16 %v197, %v196
    %v212 = vpack.c.b16 %v199, %v198
    %v213 = vpack.c.b16 %v201, %v200
    %v214 = vpack.c.b16 %v203, %v202
    %v215 = vpack.c.b16 %v205, %v204
    %v216 = vpack.c.b16 %v207, %v206
    %v217 = vpack.c.b16 %v209, %v208
    %226 = vmatpush.bf16.msra.mxu0 %v217
    %227 = vmatpush.bf16.msra.mxu0 %v216
    %228 = vmatpush.bf16.msra.mxu0 %v215
    %229 = vmatpush.bf16.msra.mxu0 %v214
    %230 = vmatpush.bf16.msra.mxu0 %v213
    %231 = vmatpush.bf16.msra.mxu0 %v212
    %232 = vmatpush.bf16.msra.mxu0 %v211
    %233 = vmatpush.bf16.msra.mxu0 %v210
    %234 = vmatmul.bf16.gmra.mxu0 %v157
    %v235 = vpop.f32.mrf.mxu0
    %v236 = vadd.f32 %v176, %v235
    %v237 = vpop.f32.mrf.mxu0
    %238 = vdwg.mxu0
    %v239 = vmax.f32 %v236, 0.0
    %v240 = vpack.c.bf16 %v239, %v239
    %v241 = vld [vmem:[#allocation7] sm:$0xf]
    %v242 = vld [vmem:[#allocation7 + $0x4] sm:$0xf]
    %v243 = vld [vmem:[#allocation7 + $0x8] sm:$0xf]
    %v244 = vld [vmem:[#allocation7 + $0xc] sm:$0xf]
    %v245 = vld [vmem:[#allocation7 + $0x10] sm:$0xf]
    %v246 = vld [vmem:[#allocation7 + $0x14] sm:$0xf]
    %v247 = vld [vmem:[#allocation7 + $0x18] sm:$0xf]
    %v248 = vld [vmem:[#allocation7 + $0x1c] sm:$0xf]
    %v249 = vld [vmem:[#allocation7 + $0x20] sm:$0xf]
    %v250 = vld [vmem:[#allocation7 + $0x24] sm:$0xf]
    %v251 = vld [vmem:[#allocation7 + $0x28] sm:$0xf]
    %v252 = vld [vmem:[#allocation7 + $0x2c] sm:$0xf]
    %v253 = vld [vmem:[#allocation7 + $0x30] sm:$0xf]
    %v254 = vld [vmem:[#allocation7 + $0x34] sm:$0xf]
    %v255 = vld [vmem:[#allocation7 + $0x38] sm:$0xf]
    %v256 = vld [vmem:[#allocation7 + $0x3c] sm:$0xf]
    %v257 = vld [vmem:[%s6] sm:$0x1]
    %v259 = vperm.slane %v257, 0
    %v277 = vunpack.c.l.b16 %v241
    %v278 = vunpack.c.l.b16 %v242
    %v279 = vunpack.c.l.b16 %v243
    %v280 = vunpack.c.l.b16 %v244
    %v281 = vunpack.c.l.b16 %v245
    %v282 = vunpack.c.l.b16 %v246
    %v283 = vunpack.c.l.b16 %v247
    %v284 = vunpack.c.l.b16 %v248
    %v285 = vunpack.c.l.b16 %v249
    %v286 = vunpack.c.l.b16 %v250
    %v287 = vunpack.c.l.b16 %v251
    %v288 = vunpack.c.l.b16 %v252
    %v289 = vunpack.c.l.b16 %v253
    %v290 = vunpack.c.l.b16 %v254
    %v291 = vunpack.c.l.b16 %v255
    %v292 = vunpack.c.l.b16 %v256
    %v293 = vpack.c.b16 %v278, %v277
    %v294 = vpack.c.b16 %v280, %v279
    %v295 = vpack.c.b16 %v282, %v281
    %v296 = vpack.c.b16 %v284, %v283
    %v297 = vpack.c.b16 %v286, %v285
    %v298 = vpack.c.b16 %v288, %v287
    %v299 = vpack.c.b16 %v290, %v289
    %v300 = vpack.c.b16 %v292, %v291
    %309 = vmatpush.bf16.msra.mxu0 %v300
    %310 = vmatpush.bf16.msra.mxu0 %v299
    %311 = vmatpush.bf16.msra.mxu0 %v298
    %312 = vmatpush.bf16.msra.mxu0 %v297
    %313 = vmatpush.bf16.msra.mxu0 %v296
    %314 = vmatpush.bf16.msra.mxu0 %v295
    %315 = vmatpush.bf16.msra.mxu0 %v294
    %316 = vmatpush.bf16.msra.mxu0 %v293
    %317 = vmatmul.bf16.gmra.mxu0 %v240
    %v318 = vpop.f32.mrf.mxu0
    %v319 = vadd.f32 %v259, %v318
    %v320 = vpop.f32.mrf.mxu0
    %321 = vdwg.mxu0
    %v322 = vlaneseq
    %v323 = vand.u32 %v322, 127
    %vm324 = vcmp.lt.s32.totalorder %v323, 10
    %v325 = vsel %vm324, %v319, -1e+30
    %326 = vmax.xlane.f32.xlu0 %v325
    %v327 = vpop.xlane.xlu0 %326
    %v328 = vsub.f32 %v325, %v327
    %v329 = vmul.f32 %v328, 1.442695
    %v330 = vpow.pop %v329
    %331 = vadd.xlane.f32.xlu0 %v330
    %v332 = vpop.xlane.xlu0 %331
    %v333 = vlog2.pop %v332
    %v334 = vmul.f32 %v333, 0.6931472
    %v335 = vsub.f32 %v328, %v334
    %336 = vst [vmem:[#allocation8] sm:$0xff] %v335
    // Predicated region
    $region42: #{classifier_forward.1} parent=1 // pred_check
      _
    $region43: #{classifier_forward.1} parent=1 // pred_check_branch
      %338 = sbr.rel (0) target = $region45
    $region44: #{classifier_forward.1} parent=1 // pred_region
      %340 = vsyncadd [#allocation4], 0
      %s342 = sshll.u32 [#allocation8], 4
      %s343 = int_to_ptr.vmem [resolvable:$true] %s342
      %s344 = sshll.u32 %s7, 4
      %s345 = int_to_ptr.hbm [resolvable:$true] %s344
      %347 = dma.vmem_to_hbm [thread:$0]  %s343, 128, %s345, [#allocation4]
    $region45: #{classifier_forward.1} parent=1 // pred_fallthru
      _
    // Predicated region
    $region46: #{classifier_forward.1} parent=1 // pred_check
      _
    $region47: #{classifier_forward.1} parent=1 // pred_check_branch
      %349 = sbr.rel (0) target = $region49
    $region48: #{classifier_forward.1} parent=1 // pred_region
      %351 = dma.done [#allocation4], 128
    $region49: #{classifier_forward.1} parent=1 // pred_fallthru
      _
    %352 = vsyncpa [#allocation3], 1
    %353 = vsyncpa [#allocation6], 1
    %354 = vsyncpa [#allocation4], 1

</llo_original>
